<compile_context>
chip_gen: v7x
topology: tpu7x:2x2x1
jax: 0.10.0
libtpu: 0.0.40
codegen_flags: <defaults>
</compile_context>

<pallas_src>
import functools

import jax
import jax.numpy as jnp
from jax.experimental import pallas as pl
from jax.experimental.pallas import tpu as pltpu

BN_EPS = 1e-5
LANE = 128
SUB = 8
EXPANSION = 4
ACT_DTYPE = jnp.bfloat16


def _round_up(x, m):
    return (x + m - 1) // m * m


def _vmem_cap_bytes():
    """Per-kernel VMEM budget: ~40 MiB on v7x (64 MiB phys), ~100 MiB on
    v5e/v6e (128 MiB phys)."""
    try:
        phys = pltpu.get_tpu_info().vmem_capacity_bytes
        if phys <= 64 * 1024 * 1024:
            return 40 * 1024 * 1024
        return 100 * 1024 * 1024
    except Exception:
        return 40 * 1024 * 1024


_VMEM_CAP = _vmem_cap_bytes()


def _vmem_limit(footprint_bytes):
    return int(min(_VMEM_CAP, max(2 * footprint_bytes + (4 << 20), 16 << 20)))


def _pick_tn(cout):
    """Lane-dense Cout tile; prefer >=2 N-blocks (v7x megacore) when Cout
    allows it, otherwise go as wide as possible (weight-streaming bound)."""
    tn = min(512, cout)
    if cout // tn < 2 and cout >= 2 * LANE:
        tn = max(LANE, (cout // 2) // LANE * LANE)
    return tn


def _pick_tk(k):
    if k <= 2048:
        return k
    for cand in (2048, 1536, 1024, 768, 512, 384, 256, 128):
        if k % cand == 0:
            return cand
    return k


# ----------------------------- Pallas kernels -----------------------------

def _matmul_bn_kernel(x_ref, w_ref, s_ref, b_ref, o_ref, acc_ref, *, relu):
    @pl.when(pl.program_id(2) == 0)
    def _():
        acc_ref[...] = jnp.zeros_like(acc_ref)

    acc_ref[...] += jnp.dot(x_ref[...], w_ref[...],
                            preferred_element_type=jnp.float32)

    @pl.when(pl.program_id(2) == pl.num_programs(2) - 1)
    def _():
        y = acc_ref[...] * s_ref[...] + b_ref[...]
        if relu:
            y = jnp.maximum(y, 0.0)
        o_ref[...] = y.astype(o_ref.dtype)


def _matmul_bn_res_kernel(x_ref, w_ref, s_ref, b_ref, r_ref, o_ref, acc_ref, *,
                          relu):
    @pl.when(pl.program_id(2) == 0)
    def _():
        acc_ref[...] = jnp.zeros_like(acc_ref)

    acc_ref[...] += jnp.dot(x_ref[...], w_ref[...],
                            preferred_element_type=jnp.float32)

    @pl.when(pl.program_id(2) == pl.num_programs(2) - 1)
    def _():
        y = (acc_ref[...] * s_ref[...] + b_ref[...]
             + r_ref[...].astype(jnp.float32))
        if relu:
            y = jnp.maximum(y, 0.0)
        o_ref[...] = y.astype(o_ref.dtype)


def _conv3x3_kernel(*refs, n_src, taps, mcomp, relu):
    """9-tap 3x3 conv: each tap is a static row-shifted slice of a flattened
    VMEM-resident activation; taps are accumulated in f32 then BN+ReLU."""
    srcs = refs[:n_src]
    w_ref, s_ref, b_ref, o_ref = refs[n_src:n_src + 4]
    acc = jnp.zeros((mcomp, o_ref.shape[1]), jnp.float32)
    for t, (si, off) in enumerate(taps):
        acc = acc + jnp.dot(srcs[si][pl.ds(off, mcomp), :], w_ref[t],
                            preferred_element_type=jnp.float32)
    y = acc * s_ref[...] + b_ref[...]
    if relu:
        y = jnp.maximum(y, 0.0)
    o_ref[...] = y.astype(o_ref.dtype)


def _maxpool_kernel(*refs, taps, mcomp):
    srcs = refs[:4]
    o_ref = refs[4]
    si0, off0 = taps[0]
    acc = srcs[si0][pl.ds(off0, mcomp), :]
    for si, off in taps[1:]:
        acc = jnp.maximum(acc, srcs[si][pl.ds(off, mcomp), :])
    o_ref[...] = acc


# ------------------------- fused matmul (1x1 convs) ------------------------

def _fused_matmul(x2d, w2d, scale, bias, residual, relu, out_dtype=ACT_DTYPE):
    m, k = x2d.shape
    cout = w2d.shape[1]
    out_bytes = jnp.dtype(out_dtype).itemsize

    mp = _round_up(max(m, 1), SUB)
    if mp <= 512:
        tm = mp
    else:
        tm = 512 if mp % 512 == 0 else 256
        mp = _round_up(mp, tm)

    kp = k if k % SUB == 0 else _round_up(k, LANE)
    tk = _pick_tk(kp)

    tn = _pick_tn(cout)
    np_ = _round_up(cout, tn)

    xp = x2d if (mp == m and kp == k) else jnp.pad(
        x2d, ((0, mp - m), (0, kp - k)))
    wpd = w2d if (kp == k and np_ == cout) else jnp.pad(
        w2d, ((0, kp - k), (0, np_ - cout)))
    sp = scale if np_ == cout else jnp.pad(scale, ((0, 0), (0, np_ - cout)))
    bp = bias if np_ == cout else jnp.pad(bias, ((0, 0), (0, np_ - cout)))

    grid = (mp // tm, np_ // tn, kp // tk)
    in_specs = [
        pl.BlockSpec((tm, tk), lambda i, j, q: (i, q)),
        pl.BlockSpec((tk, tn), lambda i, j, q: (q, j)),
        pl.BlockSpec((1, tn), lambda i, j, q: (0, j)),
        pl.BlockSpec((1, tn), lambda i, j, q: (0, j)),
    ]
    args = [xp, wpd, sp, bp]
    if residual is not None:
        rp = residual if (mp == m and np_ == cout) else jnp.pad(
            residual, ((0, mp - m), (0, np_ - cout)))
        in_specs.append(pl.BlockSpec((tm, tn), lambda i, j, q: (i, j)))
        args.append(rp)
        kernel = functools.partial(_matmul_bn_res_kernel, relu=relu)
    else:
        kernel = functools.partial(_matmul_bn_kernel, relu=relu)

    footprint = (2 * (tm * tk + tk * tn) * 2 + 4 * tn * 4
                 + (2 * tm * tn * 2 if residual is not None else 0)
                 + 2 * tm * tn * out_bytes + tm * tn * 4)
    bytes_acc = ((mp * kp + kp * np_) * 2 + 2 * np_ * 4 + mp * np_ * out_bytes
                 + (mp * np_ * 2 if residual is not None else 0))

    out = pl.pallas_call(
        kernel,
        out_shape=jax.ShapeDtypeStruct((mp, np_), out_dtype),
        grid=grid,
        in_specs=in_specs,
        out_specs=pl.BlockSpec((tm, tn), lambda i, j, q: (i, j)),
        scratch_shapes=[pltpu.VMEM((tm, tn), jnp.float32)],
        compiler_params=pltpu.CompilerParams(
            dimension_semantics=("parallel", "parallel", "arbitrary"),
            vmem_limit_bytes=_vmem_limit(footprint)),
        cost_estimate=pl.CostEstimate(
            flops=2 * mp * kp * np_, transcendentals=0,
            bytes_accessed=int(bytes_acc)),
    )(*args)
    if mp != m or np_ != cout:
        out = out[:m, :cout]
    return out


# ---------------------------- 3x3 convolutions -----------------------------

_DIRECT_3X3_ACT_LIMIT = 8 * 1024 * 1024   # resident-activation byte budget


def _conv3x3_direct(x, w9, scale, bias, stride, dilation, relu):
    n, h, w, cin = x.shape
    cout = w9.shape[-1]
    d = dilation

    if stride == 1:
        gw = w + 2 * d
        gh0 = h + 2 * d
        oh, ow = h, w
        max_off = 2 * d * (gw + 1)
        extra = -(-7 // gw)                       # slack rows for M alignment
        gh = gh0 + extra
        xp = jnp.pad(x, ((0, 0), (d, d + extra), (d, d), (0, 0)))
        srcs = [xp.reshape(n * gh * gw, cin)]
        taps = tuple((0, di * d * gw + dj * d)
                     for di in range(3) for dj in range(3))
    else:  # stride == 2 (dilation == 1 in this architecture)
        hp, wp = h + 2, w + 2
        oh, ow = (hp - 3) // 2 + 1, (wp - 3) // 2 + 1
        gh0, gw = oh + 1, ow + 1
        max_off = gw + 1
        extra = -(-7 // gw)
        gh = gh0 + extra
        xp = jnp.pad(x, ((0, 0), (1, 1 + 2 * gh - hp), (1, 1 + 2 * gw - wp),
                         (0, 0)))
        srcs = [xp[:, i::2, j::2, :].reshape(n * gh * gw, cin)
                for i in range(2) for j in range(2)]
        taps = tuple(((di % 2) * 2 + dj % 2, (di // 2) * gw + dj // 2)
                     for di in range(3) for dj in range(3))

    n_src = len(srcs)
    m_src = n * gh * gw
    mcomp = _round_up((n - 1) * gh * gw + (oh - 1) * gw + ow, SUB)
    assert mcomp + max_off <= m_src

    tn = _pick_tn(cout)
    assert cout % tn == 0
    grid = (cout // tn,)
    kernel = functools.partial(_conv3x3_kernel, n_src=n_src, taps=taps,
                               mcomp=mcomp, relu=relu)
    in_specs = ([pl.BlockSpec((m_src, cin), lambda j: (0, 0))
                 for _ in range(n_src)]
                + [pl.BlockSpec((9, cin, tn), lambda j: (0, 0, j)),
                   pl.BlockSpec((1, tn), lambda j: (0, j)),
                   pl.BlockSpec((1, tn), lambda j: (0, j))])
    footprint = (2 * n_src * m_src * cin * 2 + 2 * 9 * cin * tn * 2
                 + 4 * tn * 4 + 2 * mcomp * tn * 2 + mcomp * tn * 4)
    bytes_acc = (n_src * m_src * cin * 2 + 9 * cin * cout * 2
                 + mcomp * cout * 2 + 2 * cout * 4)
    out_full = pl.pallas_call(
        kernel,
        out_shape=jax.ShapeDtypeStruct((mcomp, cout), ACT_DTYPE),
        grid=grid,
        in_specs=in_specs,
        out_specs=pl.BlockSpec((mcomp, tn), lambda j: (0, j)),
        compiler_params=pltpu.CompilerParams(
            dimension_semantics=("parallel",),
            vmem_limit_bytes=_vmem_limit(footprint)),
        cost_estimate=pl.CostEstimate(
            flops=2 * 9 * mcomp * cin * cout, transcendentals=0,
            bytes_accessed=int(bytes_acc)),
    )(*(srcs + [w9, scale, bias]))
    out = jnp.pad(out_full, ((0, m_src - mcomp), (0, 0)))
    return out.reshape(n, gh, gw, cout)[:, :oh, :ow, :]


def _im2col(x, kh, kw, stride, padding, dil):
    n, h, w, c = x.shape
    xp = jnp.pad(x, ((0, 0), (padding, padding), (padding, padding), (0, 0)))
    hp, wp = h + 2 * padding, w + 2 * padding
    eff_h = (kh - 1) * dil + 1
    eff_w = (kw - 1) * dil + 1
    ho = (hp - eff_h) // stride + 1
    wo = (wp - eff_w) // stride + 1
    cols = []
    for i in range(kh):
        for j in range(kw):
            r0, c0 = i * dil, j * dil
            cols.append(xp[:, r0:r0 + (ho - 1) * stride + 1:stride,
                           c0:c0 + (wo - 1) * stride + 1:stride, :])
    pat = jnp.stack(cols, axis=3)
    return pat.reshape(n * ho * wo, kh * kw * c), ho, wo


def _conv3x3(x, p, relu):
    n, h, w, cin = x.shape
    stride, d = p["stride"], p["dilation"]
    act_bytes = n * (h + 2 * d + 8) * (w + 2 * d + 1) * cin * 2
    if (cin % SUB == 0 and stride in (1, 2)
            and act_bytes <= _DIRECT_3X3_ACT_LIMIT
            and not (stride == 2 and d != 1)):
        return _conv3x3_direct(x, p["w"], p["scale"], p["bias"], stride, d,
                               relu)
    # TODO(synk): im2col fallback (3-channel stem conv / very large
    # activations) still materializes 9x patches in HBM.
    patches, oh, ow = _im2col(x, 3, 3, stride, d, d)
    cout = p["w"].shape[-1]
    w2 = p["w"].reshape(9 * cin, cout)
    out = _fused_matmul(patches, w2, p["scale"], p["bias"], None, relu)
    return out.reshape(n, oh, ow, cout)


def conv_bn(x, p, relu=True, residual=None):
    if p["ksize"] == 1:
        s = p["stride"]
        if s > 1:
            # TODO(synk): fold the stride-2 subsample into the kernel's
            # index_map instead of a host-side strided slice.
            x = x[:, ::s, ::s, :]
        n, ho, wo, cin = x.shape
        x2 = x.reshape(n * ho * wo, cin)
        r2 = (residual.reshape(n * ho * wo, -1)
              if residual is not None else None)
        out = _fused_matmul(x2, p["w"], p["scale"], p["bias"], r2, relu)
        return out.reshape(n, ho, wo, -1)
    assert residual is None
    return _conv3x3(x, p, relu)


def maxpool_3x3_s2(x):
    """nn.MaxPool2d(3, stride=2, padding=1): even/odd phase split + in-kernel
    9-tap max over constant row shifts (no 9x HBM stack)."""
    n, h, w, c = x.shape
    hp, wp = h + 2, w + 2
    oh, ow = (hp - 3) // 2 + 1, (wp - 3) // 2 + 1
    gh, gw = oh + 1, ow + 1
    xp = jnp.pad(x, ((0, 0), (1, 1 + 2 * gh - hp), (1, 1 + 2 * gw - wp),
                     (0, 0)), constant_values=float("-inf"))
    srcs = [xp[:, i::2, j::2, :].reshape(n * gh * gw, c)
            for i in range(2) for j in range(2)]
    taps = tuple(((di % 2) * 2 + dj % 2, (di // 2) * gw + dj // 2)
                 for di in range(3) for dj in range(3))
    m_src = n * gh * gw
    mcomp = m_src - (gw + 1)
    elt = jnp.dtype(x.dtype).itemsize
    footprint = 4 * 2 * m_src * c * elt + 2 * mcomp * c * elt
    kernel = functools.partial(_maxpool_kernel, taps=taps, mcomp=mcomp)
    out_full = pl.pallas_call(
        kernel,
        out_shape=jax.ShapeDtypeStruct((mcomp, c), x.dtype),
        grid=(1,),
        in_specs=[pl.BlockSpec((m_src, c), lambda i: (0, 0))
                  for _ in range(4)],
        out_specs=pl.BlockSpec((mcomp, c), lambda i: (0, 0)),
        compiler_params=pltpu.CompilerParams(
            dimension_semantics=("arbitrary",),
            vmem_limit_bytes=_vmem_limit(footprint)),
        cost_estimate=pl.CostEstimate(
            flops=8 * mcomp * c, transcendentals=0,
            bytes_accessed=int((m_src + mcomp) * c * elt)),
    )(*srcs)
    out = jnp.pad(out_full, ((0, m_src - mcomp), (0, 0)))
    return out.reshape(n, gh, gw, c)[:, :oh, :ow, :]


# ------------------------------ parameters --------------------------------

class ParamGen:
    def __init__(self, key):
        self.key = key
        self.count = 0

    def next(self):
        self.count += 1
        return jax.random.fold_in(self.key, self.count)


def make_conv_bn_params(pg, cout, cin, k, stride=1, dilation=1):
    """He-init conv + random BN folded into per-channel scale/bias; weight is
    pre-transposed/cast to bf16 MXU layout once at build time."""
    fan_in = cin * k * k
    std = (2.0 / fan_in) ** 0.5
    w = std * jax.random.normal(pg.next(), (cout, cin, k, k), jnp.float32)
    gamma = 1.0 + 0.1 * jax.random.normal(pg.next(), (cout,), jnp.float32)
    beta = 0.1 * jax.random.normal(pg.next(), (cout,), jnp.float32)
    mean = 0.1 * jax.random.normal(pg.next(), (cout,), jnp.float32)
    var = 1.0 + 0.1 * jnp.abs(jax.random.normal(pg.next(), (cout,),
                                                jnp.float32))
    scale = gamma / jnp.sqrt(var + BN_EPS)
    bias = beta - mean * scale
    wt = jnp.transpose(w, (2, 3, 1, 0))          # (kh, kw, cin, cout)
    wt = wt.reshape(cin, cout) if k == 1 else wt.reshape(k * k, cin, cout)
    return {"w": wt.astype(ACT_DTYPE),
            "scale": scale.reshape(1, cout),
            "bias": bias.reshape(1, cout),
            "ksize": k, "stride": stride, "dilation": dilation}


def build_resnet_params(pg, in_planes, layers, dilation):
    params = {
        "conv1": make_conv_bn_params(pg, 64, in_planes, 3, stride=2),
        "conv2": make_conv_bn_params(pg, 64, 64, 3, stride=1),
        "conv3": make_conv_bn_params(pg, 128, 64, 3, stride=1),
    }
    inplanes = 128
    strides = [1,
               1 if dilation[1] != 1 else 2,
               1 if dilation[2] != 1 else 2,
               1 if dilation[3] != 1 else 2]
    planes_list = [64, 128, 256, 512]
    for li in range(4):
        planes, stride = planes_list[li], strides[li]
        blocks = []
        for bi in range(layers[li]):
            s = stride if bi == 0 else 1
            blk = {
                "c1": make_conv_bn_params(pg, planes, inplanes, 1),
                "c2": make_conv_bn_params(pg, planes, planes, 3, stride=s,
                                          dilation=dilation[li]),
                "c3": make_conv_bn_params(pg, planes * EXPANSION, planes, 1),
            }
            if bi == 0 and (stride != 1 or inplanes != planes * EXPANSION):
                blk["cd"] = make_conv_bn_params(pg, planes * EXPANSION,
                                                inplanes, 1, stride=stride)
            blocks.append(blk)
            inplanes = planes * EXPANSION
        params[f"layer{li + 1}"] = blocks
    return params


# -------------------------------- forward ---------------------------------

def bottleneck_forward(x, blk):
    out = conv_bn(x, blk["c1"], relu=True)
    out = conv_bn(out, blk["c2"], relu=True)
    if "cd" in blk:
        residual = conv_bn(x, blk["cd"], relu=False)
    else:
        residual = x
    # relu(bn(conv3(out)) + residual), fused in the matmul epilogue.
    return conv_bn(out, blk["c3"], relu=True, residual=residual)


def resnet_forward(x_nchw, params, start_module=1, end_module=5, is_fpn=False):
    x = jnp.transpose(x_nchw, (0, 2, 3, 1)).astype(ACT_DTYPE)
    if start_module <= 1:
        x = conv_bn(x, params["conv1"], relu=True)
        x = conv_bn(x, params["conv2"], relu=True)
        x = conv_bn(x, params["conv3"], relu=True)
        x = maxpool_3x3_s2(x)
        start_module = 2
    features = []
    for i in range(start_module, end_module + 1):
        for blk in params[f"layer{i - 1}"]:
            x = bottleneck_forward(x, blk)
        features.append(x)

    def to_nchw(a):
        return jnp.transpose(a, (0, 3, 1, 2)).astype(jnp.float32)

    if is_fpn:
        if len(features) == 1:
            return to_nchw(features[0])
        return tuple(to_nchw(f) for f in features)
    return to_nchw(x)


if __name__ == "__main__":
    key = jax.random.PRNGKey(0)
    pg = ParamGen(jax.random.fold_in(key, 12345))

    in_planes = 3
    layers = [3, 4, 23, 3]          # ResNet-101 configuration
    dilation = [1, 1, 1, 1]
    params = build_resnet_params(pg, in_planes, layers, dilation)

    x = jax.random.normal(jax.random.fold_in(key, 1),
                          (2, in_planes, 16, 16), jnp.float32)

    out = resnet_forward(x, params)
    out = jax.block_until_ready(out)
    assert out.shape == (2, 512 * EXPANSION, 1, 1), out.shape
    assert bool(jnp.all(jnp.isfinite(out)))
    print("KERNEL_OK")
</pallas_src>

<mosaic_0001>
module attributes {stable_mosaic.version = 11 : i64} {
  func.func @_matmul_bn_kernel(%arg0: i32, %arg1: i32, %arg2: i32, %arg3: memref<128x128xbf16, #tpu.memory_space<vmem>>, %arg4: memref<128x64xbf16, #tpu.memory_space<vmem>>, %arg5: memref<1x64xf32, #tpu.memory_space<vmem>>, %arg6: memref<1x64xf32, #tpu.memory_space<vmem>>, %arg7: memref<128x64xbf16, #tpu.memory_space<vmem>>, %arg8: memref<128x64xf32, #tpu.memory_space<vmem>>) attributes {dimension_semantics = [#tpu.dimension_semantics<parallel>, #tpu.dimension_semantics<parallel>, #tpu.dimension_semantics<arbitrary>], iteration_bounds = array<i64: 1, 1, 1>, scalar_prefetch = 0 : i64, scratch_operands = 1 : i64, tpu.core_type = #tpu.core_type<tc>, window_params = [{transform_indices = @transform_0, window_bounds = array<i64: 128, 128>}, {transform_indices = @transform_1, window_bounds = array<i64: 128, 64>}, {transform_indices = @transform_2, window_bounds = array<i64: 1, 64>}, {transform_indices = @transform_3, window_bounds = array<i64: 1, 64>}, {transform_indices = @transform_4, window_bounds = array<i64: 128, 64>}]} {
    %c0_i32 = arith.constant 0 : i32
    %0 = arith.cmpi eq, %arg2, %c0_i32 : i32
    %1 = arith.extui %0 : i1 to i32
    %c0_i32_0 = arith.constant 0 : i32
    %2 = arith.cmpi ne, %1, %c0_i32_0 : i32
    scf.if %2 {
      %cst_10 = arith.constant 0.000000e+00 : f32
      %12 = vector.broadcast %cst_10 : f32 to vector<128x64xf32>
      %c0_11 = arith.constant 0 : index
      %c0_12 = arith.constant 0 : index
      %13 = vector.load %arg8[%c0_11, %c0_12] : memref<128x64xf32, #tpu.memory_space<vmem>>, vector<128x64xf32>
      tpu.vector_store %arg8[%c0_11, %c0_12], %12 {strides = array<i32>} : memref<128x64xf32, #tpu.memory_space<vmem>>, vector<128x64xf32>,
    } else {
    }
    %c0 = arith.constant 0 : index
    %c0_1 = arith.constant 0 : index
    %3 = vector.load %arg8[%c0, %c0_1] : memref<128x64xf32, #tpu.memory_space<vmem>>, vector<128x64xf32>
    %c0_2 = arith.constant 0 : index
    %c0_3 = arith.constant 0 : index
    %4 = vector.load %arg3[%c0_2, %c0_3] : memref<128x128xbf16, #tpu.memory_space<vmem>>, vector<128x128xbf16>
    %c0_4 = arith.constant 0 : index
    %c0_5 = arith.constant 0 : index
    %5 = vector.load %arg4[%c0_4, %c0_5] : memref<128x64xbf16, #tpu.memory_space<vmem>>, vector<128x64xbf16>
    %cst = arith.constant dense<0.000000e+00> : vector<128x64xf32>
    %6 = tpu.matmul %4, %5, %cst {dimension_numbers = #tpu.dot_dimension_numbers<[1], [0], [0], [1], [0, 0, 1, 1], [], []>} : vector<128x128xbf16>, vector<128x64xbf16>, vector<128x64xf32> -> vector<128x64xf32>
    %7 = arith.addf %3, %6 : vector<128x64xf32>
    %c0_6 = arith.constant 0 : index
    %c0_7 = arith.constant 0 : index
    %8 = vector.load %arg8[%c0_6, %c0_7] : memref<128x64xf32, #tpu.memory_space<vmem>>, vector<128x64xf32>
    tpu.vector_store %arg8[%c0_6, %c0_7], %7 {strides = array<i32>} : memref<128x64xf32, #tpu.memory_space<vmem>>, vector<128x64xf32>,
    %c0_i32_8 = arith.constant 0 : i32
    %9 = arith.cmpi eq, %arg2, %c0_i32_8 : i32
    %10 = arith.extui %9 : i1 to i32
    %c0_i32_9 = arith.constant 0 : i32
    %11 = arith.cmpi ne, %10, %c0_i32_9 : i32
    scf.if %11 {
      %c0_10 = arith.constant 0 : index
      %c0_11 = arith.constant 0 : index
      %12 = vector.load %arg8[%c0_10, %c0_11] : memref<128x64xf32, #tpu.memory_space<vmem>>, vector<128x64xf32>
      %c0_12 = arith.constant 0 : index
      %c0_13 = arith.constant 0 : index
      %13 = vector.load %arg5[%c0_12, %c0_13] : memref<1x64xf32, #tpu.memory_space<vmem>>, vector<1x64xf32>
      %14 = vector.broadcast %13 : vector<1x64xf32> to vector<128x64xf32>
      %15 = arith.mulf %12, %14 : vector<128x64xf32>
      %c0_14 = arith.constant 0 : index
      %c0_15 = arith.constant 0 : index
      %16 = vector.load %arg6[%c0_14, %c0_15] : memref<1x64xf32, #tpu.memory_space<vmem>>, vector<1x64xf32>
      %17 = vector.broadcast %16 : vector<1x64xf32> to vector<128x64xf32>
      %18 = arith.addf %15, %17 : vector<128x64xf32>
      %cst_16 = arith.constant 0.000000e+00 : f32
      %19 = vector.broadcast %cst_16 : f32 to vector<128x64xf32>
      %20 = arith.maximumf %18, %19 : vector<128x64xf32>
      %21 = arith.truncf %20 : vector<128x64xf32> to vector<128x64xbf16>
      %c0_17 = arith.constant 0 : index
      %c0_18 = arith.constant 0 : index
      %22 = vector.load %arg7[%c0_17, %c0_18] : memref<128x64xbf16, #tpu.memory_space<vmem>>, vector<128x64xbf16>
      tpu.vector_store %arg7[%c0_17, %c0_18], %21 {strides = array<i32>} : memref<128x64xbf16, #tpu.memory_space<vmem>>, vector<128x64xbf16>,
    } else {
    }
    return
  }
  func.func @transform_0(%arg0: i32, %arg1: i32, %arg2: i32) -> (i32, i32) {
    %c0_i32 = arith.constant 0 : i32
    return %arg0, %arg2 : i32, i32
  }
  func.func @transform_1(%arg0: i32, %arg1: i32, %arg2: i32) -> (i32, i32) {
    %c0_i32 = arith.constant 0 : i32
    return %arg2, %arg1 : i32, i32
  }
  func.func @transform_2(%arg0: i32, %arg1: i32, %arg2: i32) -> (i32, i32) {
    %c0_i32 = arith.constant 0 : i32
    %c0_i32_0 = arith.constant 0 : i32
    return %c0_i32, %arg1 : i32, i32
  }
  func.func @transform_3(%arg0: i32, %arg1: i32, %arg2: i32) -> (i32, i32) {
    %c0_i32 = arith.constant 0 : i32
    %c0_i32_0 = arith.constant 0 : i32
    return %c0_i32, %arg1 : i32, i32
  }
  func.func @transform_4(%arg0: i32, %arg1: i32, %arg2: i32) -> (i32, i32) {
    %c0_i32 = arith.constant 0 : i32
    return %arg0, %arg1 : i32, i32
  }
}

</mosaic_0001>

<llo_original>
// kernel: tpu_custom_call.1
$region0: #{tpu_custom_call.1}
  #allocation0 [shape = 'u32[]', space=smem, size = 0x4, offset = 0x4, fixed_abs, tag = 'smem constant byte address 0x4 - core index']
  #allocation1 [shape = 'u32[144,128]{1,0:T(1,128)}', space=vmem, size = 0x12000, scoped, tag = 'internal scratch']
  #allocation2 [shape = 'f32[128,64]{1,0:T(8,128)}', space=vmem, size = 0x10000, scoped, tag = 'scratch operand']
  %s0 = inlined_call_operand.vmem [shape: bf16[128,128], index: 0, kind: input, shape index: {}]
  %s1 = inlined_call_operand.vmem [shape: bf16[128,64], index: 1, kind: input, shape index: {}]
  %s2 = inlined_call_operand.vmem [shape: f32[1,64], index: 2, kind: input, shape index: {}]
  %s3 = inlined_call_operand.vmem [shape: f32[1,64], index: 3, kind: input, shape index: {}]
  %s4 = inlined_call_operand.vmem [shape: bf16[128,64], index: 4, kind: output, shape index: {}]
  %s5 = sld [smem:[#allocation0]]
  $region34: #{tpu_custom_call.1} parent=0
    _
  %s7 = ssub.s32 1, %s5
  %s8 = scalar_select 0, %s7, %s5
  // Predicated region
  $region2: #{tpu_custom_call.1} parent=0 // pred_check
    _
  $region3: #{tpu_custom_call.1} parent=0 // pred_check_branch
    %10 = sbr.rel (0) target = $region5
  $region4: #{tpu_custom_call.1} parent=0 // pred_region
    _
  $region5: #{tpu_custom_call.1} parent=0 // pred_fallthru
    _
  // Predicated region
  $region6: #{tpu_custom_call.1} parent=0 // pred_check
    _
  $region7: #{tpu_custom_call.1} parent=0 // pred_check_branch
    %12 = sbr.rel (0) target = $region9
  $region8: #{tpu_custom_call.1} parent=0 // pred_region
    _
  $region9: #{tpu_custom_call.1} parent=0 // pred_fallthru
    _
  // Predicated region
  $region10: #{tpu_custom_call.1} parent=0 // pred_check
    _
  $region11: #{tpu_custom_call.1} parent=0 // pred_check_branch
    %14 = sbr.rel (0) target = $region13
  $region12: #{tpu_custom_call.1} parent=0 // pred_region
    _
  $region13: #{tpu_custom_call.1} parent=0 // pred_fallthru
    _
  // Predicated region
  $region14: #{tpu_custom_call.1} parent=0 // pred_check
    _
  $region15: #{tpu_custom_call.1} parent=0 // pred_check_branch
    %16 = sbr.rel (0) target = $region17
  $region16: #{tpu_custom_call.1} parent=0 // pred_region
    _
  $region17: #{tpu_custom_call.1} parent=0 // pred_fallthru
    _
  %p18 = scmp.eq.s32.totalorder 0, 0
  // Predicated region
  $region18: #{tpu_custom_call.1} parent=0 // pred_check
    %p19 = pneg %p18
  $region19: #{tpu_custom_call.1} parent=0 // pred_check_branch
    %21 = sbr.rel (%p19) target = $region21
  $region20: #{tpu_custom_call.1} parent=0 // pred_region
    %vm22 = vcmask 523264
    %23 = vst.msk [vmem:[#allocation2] sm:$0xff] %vm22, 0.0
    %24 = vst.msk [vmem:[#allocation2 + $0x8] sm:$0xff] %vm22, 0.0
    %25 = vst.msk [vmem:[#allocation2 + $0x10] sm:$0xff] %vm22, 0.0
    %26 = vst.msk [vmem:[#allocation2 + $0x18] sm:$0xff] %vm22, 0.0
    %27 = vst.msk [vmem:[#allocation2 + $0x20] sm:$0xff] %vm22, 0.0
    %28 = vst.msk [vmem:[#allocation2 + $0x28] sm:$0xff] %vm22, 0.0
    %29 = vst.msk [vmem:[#allocation2 + $0x30] sm:$0xff] %vm22, 0.0
    %30 = vst.msk [vmem:[#allocation2 + $0x38] sm:$0xff] %vm22, 0.0
    %31 = vst.msk [vmem:[#allocation2 + $0x40] sm:$0xff] %vm22, 0.0
    %32 = vst.msk [vmem:[#allocation2 + $0x48] sm:$0xff] %vm22, 0.0
    %33 = vst.msk [vmem:[#allocation2 + $0x50] sm:$0xff] %vm22, 0.0
    %34 = vst.msk [vmem:[#allocation2 + $0x58] sm:$0xff] %vm22, 0.0
    %35 = vst.msk [vmem:[#allocation2 + $0x60] sm:$0xff] %vm22, 0.0
    %36 = vst.msk [vmem:[#allocation2 + $0x68] sm:$0xff] %vm22, 0.0
    %37 = vst.msk [vmem:[#allocation2 + $0x70] sm:$0xff] %vm22, 0.0
    %38 = vst.msk [vmem:[#allocation2 + $0x78] sm:$0xff] %vm22, 0.0
  $region21: #{tpu_custom_call.1} parent=0 // pred_fallthru
    _
  %v39 = vld [vmem:[#allocation2] sm:$0xff]
  %v40 = vld [vmem:[#allocation2 + $0x8] sm:$0xff]
  %v41 = vld [vmem:[#allocation2 + $0x10] sm:$0xff]
  %v42 = vld [vmem:[#allocation2 + $0x18] sm:$0xff]
  %v43 = vld [vmem:[#allocation2 + $0x20] sm:$0xff]
  %v44 = vld [vmem:[#allocation2 + $0x28] sm:$0xff]
  %v45 = vld [vmem:[#allocation2 + $0x30] sm:$0xff]
  %v46 = vld [vmem:[#allocation2 + $0x38] sm:$0xff]
  %v47 = vld [vmem:[#allocation2 + $0x40] sm:$0xff]
  %v48 = vld [vmem:[#allocation2 + $0x48] sm:$0xff]
  %v49 = vld [vmem:[#allocation2 + $0x50] sm:$0xff]
  %v50 = vld [vmem:[#allocation2 + $0x58] sm:$0xff]
  %v51 = vld [vmem:[#allocation2 + $0x60] sm:$0xff]
  %v52 = vld [vmem:[#allocation2 + $0x68] sm:$0xff]
  %v53 = vld [vmem:[#allocation2 + $0x70] sm:$0xff]
  %v54 = vld [vmem:[#allocation2 + $0x78] sm:$0xff]
  %v55 = vld [vmem:[%s0] sm:$0xf]
  %v56 = vld [vmem:[%s0 + $0x4] sm:$0xf]
  %v57 = vld [vmem:[%s0 + $0x8] sm:$0xf]
  %v58 = vld [vmem:[%s0 + $0xc] sm:$0xf]
  %v59 = vld [vmem:[%s0 + $0x10] sm:$0xf]
  %v60 = vld [vmem:[%s0 + $0x14] sm:$0xf]
  %v61 = vld [vmem:[%s0 + $0x18] sm:$0xf]
  %v62 = vld [vmem:[%s0 + $0x1c] sm:$0xf]
  %v63 = vld [vmem:[%s0 + $0x20] sm:$0xf]
  %v64 = vld [vmem:[%s0 + $0x24] sm:$0xf]
  %v65 = vld [vmem:[%s0 + $0x28] sm:$0xf]
  %v66 = vld [vmem:[%s0 + $0x2c] sm:$0xf]
  %v67 = vld [vmem:[%s0 + $0x30] sm:$0xf]
  %v68 = vld [vmem:[%s0 + $0x34] sm:$0xf]
  %v69 = vld [vmem:[%s0 + $0x38] sm:$0xf]
  %v70 = vld [vmem:[%s0 + $0x3c] sm:$0xf]
  %v71 = vld [vmem:[%s1] sm:$0xf]
  %v72 = vld [vmem:[%s1 + $0x4] sm:$0xf]
  %v73 = vld [vmem:[%s1 + $0x8] sm:$0xf]
  %v74 = vld [vmem:[%s1 + $0xc] sm:$0xf]
  %v75 = vld [vmem:[%s1 + $0x10] sm:$0xf]
  %v76 = vld [vmem:[%s1 + $0x14] sm:$0xf]
  %v77 = vld [vmem:[%s1 + $0x18] sm:$0xf]
  %v78 = vld [vmem:[%s1 + $0x1c] sm:$0xf]
  %v79 = vld [vmem:[%s1 + $0x20] sm:$0xf]
  %v80 = vld [vmem:[%s1 + $0x24] sm:$0xf]
  %v81 = vld [vmem:[%s1 + $0x28] sm:$0xf]
  %v82 = vld [vmem:[%s1 + $0x2c] sm:$0xf]
  %v83 = vld [vmem:[%s1 + $0x30] sm:$0xf]
  %v84 = vld [vmem:[%s1 + $0x34] sm:$0xf]
  %v85 = vld [vmem:[%s1 + $0x38] sm:$0xf]
  %v86 = vld [vmem:[%s1 + $0x3c] sm:$0xf]
  %v103 = vunpack.c.l.b16 %v55
  %v104 = vunpack.c.l.b16 %v56
  %v105 = vunpack.c.l.b16 %v57
  %v106 = vunpack.c.l.b16 %v58
  %v107 = vunpack.c.l.b16 %v59
  %v108 = vunpack.c.l.b16 %v60
  %v109 = vunpack.c.l.b16 %v61
  %v110 = vunpack.c.l.b16 %v62
  %v111 = vunpack.c.l.b16 %v63
  %v112 = vunpack.c.l.b16 %v64
  %v113 = vunpack.c.l.b16 %v65
  %v114 = vunpack.c.l.b16 %v66
  %v115 = vunpack.c.l.b16 %v67
  %v116 = vunpack.c.l.b16 %v68
  %v117 = vunpack.c.l.b16 %v69
  %v118 = vunpack.c.l.b16 %v70
  %v119 = vpack.c.b16 %v104, %v103
  %v120 = vpack.c.b16 %v106, %v105
  %v121 = vpack.c.b16 %v108, %v107
  %v122 = vpack.c.b16 %v110, %v109
  %v123 = vpack.c.b16 %v112, %v111
  %v124 = vpack.c.b16 %v114, %v113
  %v125 = vpack.c.b16 %v116, %v115
  %v126 = vpack.c.b16 %v118, %v117
  %v151 = vunpack.c.l.b16 %v71
  %v152 = vunpack.c.l.b16 %v72
  %v153 = vunpack.c.l.b16 %v73
  %v154 = vunpack.c.l.b16 %v74
  %v155 = vunpack.c.l.b16 %v75
  %v156 = vunpack.c.l.b16 %v76
  %v157 = vunpack.c.l.b16 %v77
  %v158 = vunpack.c.l.b16 %v78
  %v159 = vunpack.c.l.b16 %v79
  %v160 = vunpack.c.l.b16 %v80
  %v161 = vunpack.c.l.b16 %v81
  %v162 = vunpack.c.l.b16 %v82
  %v163 = vunpack.c.l.b16 %v83
  %v164 = vunpack.c.l.b16 %v84
  %v165 = vunpack.c.l.b16 %v85
  %v166 = vunpack.c.l.b16 %v86
  %v167 = vpack.c.b16 %v152, %v151
  %v168 = vpack.c.b16 %v154, %v153
  %v169 = vpack.c.b16 %v156, %v155
  %v170 = vpack.c.b16 %v158, %v157
  %v171 = vpack.c.b16 %v160, %v159
  %v172 = vpack.c.b16 %v162, %v161
  %v173 = vpack.c.b16 %v164, %v163
  %v174 = vpack.c.b16 %v166, %v165
  %183 = vmatprep.subr.bf16.mxu0 0
  %184 = vmatpush1.bf16.msra.mxu0 %v167
  %185 = vmatprep.subr.bf16.mxu0 0
  %186 = vmatpush1.bf16.msra.mxu0 %v168
  %187 = vmatprep.subr.bf16.mxu0 0
  %188 = vmatpush1.bf16.msra.mxu0 %v169
  %189 = vmatprep.subr.bf16.mxu0 0
  %190 = vmatpush1.bf16.msra.mxu0 %v170
  %191 = vmatprep.subr.bf16.mxu0 0
  %192 = vmatpush1.bf16.msra.mxu0 %v171
  %193 = vmatprep.subr.bf16.mxu0 0
  %194 = vmatpush1.bf16.msra.mxu0 %v172
  %195 = vmatprep.subr.bf16.mxu0 0
  %196 = vmatpush1.bf16.msra.mxu0 %v173
  %197 = vmatprep.subr.bf16.mxu0 0
  %198 = vmatpush1.bf16.msra.mxu0 %v174
  %199 = vmatprep.subr.bf16.mxu0 0
  %200 = vmatpush1.bf16.msra.mxu0 0
  %201 = vmatprep.subr.bf16.mxu0 0
  %202 = vmatpush1.bf16.msra.mxu0 0
  %203 = vmatprep.subr.bf16.mxu0 0
  %204 = vmatpush1.bf16.msra.mxu0 0
  %205 = vmatprep.subr.bf16.mxu0 0
  %206 = vmatpush1.bf16.msra.mxu0 0
  %207 = vmatprep.subr.bf16.mxu0 0
  %208 = vmatpush1.bf16.msra.mxu0 0
  %209 = vmatprep.subr.bf16.mxu0 0
  %210 = vmatpush1.bf16.msra.mxu0 0
  %211 = vmatprep.subr.bf16.mxu0 0
  %212 = vmatpush1.bf16.msra.mxu0 0
  %213 = vmatprep.subr.bf16.mxu0 0
  %214 = vmatpush1.bf16.msra.mxu0 0
  %215 = vmatprep.mubr.bf16.mxu0 0
  %216 = vmatmul.mubr.bf16.gmra.mrb[0].mxu0 %v119
  %v217 = vpop.f32.mrb[0].mxu0
  %v218 = vadd.f32 0.0, %v217
  %v219 = vpop.f32.mrb[0].mxu0
  %v220 = vpop.f32.mrb[0].mxu0
  %v221 = vadd.f32 0.0, %v220
  %v222 = vpop.f32.mrb[0].mxu0
  %223 = vmatprep.mubr.bf16.mxu0 0
  %224 = vmatmul.mubr.bf16.gmra.mrb[0].mxu0 %v120
  %v225 = vpop.f32.mrb[0].mxu0
  %v226 = vadd.f32 0.0, %v225
  %v227 = vpop.f32.mrb[0].mxu0
  %v228 = vpop.f32.mrb[0].mxu0
  %v229 = vadd.f32 0.0, %v228
  %v230 = vpop.f32.mrb[0].mxu0
  %231 = vmatprep.mubr.bf16.mxu0 0
  %232 = vmatmul.mubr.bf16.gmra.mrb[0].mxu0 %v121
  %v233 = vpop.f32.mrb[0].mxu0
  %v234 = vadd.f32 0.0, %v233
  %v235 = vpop.f32.mrb[0].mxu0
  %v236 = vpop.f32.mrb[0].mxu0
  %v237 = vadd.f32 0.0, %v236
  %v238 = vpop.f32.mrb[0].mxu0
  %239 = vmatprep.mubr.bf16.mxu0 0
  %240 = vmatmul.mubr.bf16.gmra.mrb[0].mxu0 %v122
  %v241 = vpop.f32.mrb[0].mxu0
  %v242 = vadd.f32 0.0, %v241
  %v243 = vpop.f32.mrb[0].mxu0
  %v244 = vpop.f32.mrb[0].mxu0
  %v245 = vadd.f32 0.0, %v244
  %v246 = vpop.f32.mrb[0].mxu0
  %247 = vmatprep.mubr.bf16.mxu0 0
  %248 = vmatmul.mubr.bf16.gmra.mrb[0].mxu0 %v123
  %v249 = vpop.f32.mrb[0].mxu0
  %v250 = vadd.f32 0.0, %v249
  %v251 = vpop.f32.mrb[0].mxu0
  %v252 = vpop.f32.mrb[0].mxu0
  %v253 = vadd.f32 0.0, %v252
  %v254 = vpop.f32.mrb[0].mxu0
  %255 = vmatprep.mubr.bf16.mxu0 0
  %256 = vmatmul.mubr.bf16.gmra.mrb[0].mxu0 %v124
  %v257 = vpop.f32.mrb[0].mxu0
  %v258 = vadd.f32 0.0, %v257
  %v259 = vpop.f32.mrb[0].mxu0
  %v260 = vpop.f32.mrb[0].mxu0
  %v261 = vadd.f32 0.0, %v260
  %v262 = vpop.f32.mrb[0].mxu0
  %263 = vmatprep.mubr.bf16.mxu0 0
  %264 = vmatmul.mubr.bf16.gmra.mrb[0].mxu0 %v125
  %v265 = vpop.f32.mrb[0].mxu0
  %v266 = vadd.f32 0.0, %v265
  %v267 = vpop.f32.mrb[0].mxu0
  %v268 = vpop.f32.mrb[0].mxu0
  %v269 = vadd.f32 0.0, %v268
  %v270 = vpop.f32.mrb[0].mxu0
  %271 = vmatprep.mubr.bf16.mxu0 0
  %272 = vmatmul.mubr.bf16.gmra.mrb[0].mxu0 %v126
  %v273 = vpop.f32.mrb[0].mxu0
  %v274 = vadd.f32 0.0, %v273
  %v275 = vpop.f32.mrb[0].mxu0
  %v276 = vpop.f32.mrb[0].mxu0
  %v277 = vadd.f32 0.0, %v276
  %v278 = vpop.f32.mrb[0].mxu0
  %279 = vdwg.mxu0
  %v280 = vadd.f32 %v39, %v218
  %v281 = vadd.f32 %v40, %v221
  %v282 = vadd.f32 %v41, %v226
  %v283 = vadd.f32 %v42, %v229
  %v284 = vadd.f32 %v43, %v234
  %v285 = vadd.f32 %v44, %v237
  %v286 = vadd.f32 %v45, %v242
  %v287 = vadd.f32 %v46, %v245
  %v288 = vadd.f32 %v47, %v250
  %v289 = vadd.f32 %v48, %v253
  %v290 = vadd.f32 %v49, %v258
  %v291 = vadd.f32 %v50, %v261
  %v292 = vadd.f32 %v51, %v266
  %v293 = vadd.f32 %v52, %v269
  %v294 = vadd.f32 %v53, %v274
  %v295 = vadd.f32 %v54, %v277
  %vm296 = vcmask 523264
  %297 = vst.msk [vmem:[#allocation2] sm:$0xff] %vm296, %v280
  %298 = vst.msk [vmem:[#allocation2 + $0x8] sm:$0xff] %vm296, %v281
  %299 = vst.msk [vmem:[#allocation2 + $0x10] sm:$0xff] %vm296, %v282
  %300 = vst.msk [vmem:[#allocation2 + $0x18] sm:$0xff] %vm296, %v283
  %301 = vst.msk [vmem:[#allocation2 + $0x20] sm:$0xff] %vm296, %v284
  %302 = vst.msk [vmem:[#allocation2 + $0x28] sm:$0xff] %vm296, %v285
  %303 = vst.msk [vmem:[#allocation2 + $0x30] sm:$0xff] %vm296, %v286
  %304 = vst.msk [vmem:[#allocation2 + $0x38] sm:$0xff] %vm296, %v287
  %305 = vst.msk [vmem:[#allocation2 + $0x40] sm:$0xff] %vm296, %v288
  %306 = vst.msk [vmem:[#allocation2 + $0x48] sm:$0xff] %vm296, %v289
  %307 = vst.msk [vmem:[#allocation2 + $0x50] sm:$0xff] %vm296, %v290
  %308 = vst.msk [vmem:[#allocation2 + $0x58] sm:$0xff] %vm296, %v291
  %309 = vst.msk [vmem:[#allocation2 + $0x60] sm:$0xff] %vm296, %v292
  %310 = vst.msk [vmem:[#allocation2 + $0x68] sm:$0xff] %vm296, %v293
  %311 = vst.msk [vmem:[#allocation2 + $0x70] sm:$0xff] %vm296, %v294
  %312 = vst.msk [vmem:[#allocation2 + $0x78] sm:$0xff] %vm296, %v295
  // Predicated region
  $region22: #{tpu_custom_call.1} parent=0 // pred_check
    %p313 = pneg %p18
  $region23: #{tpu_custom_call.1} parent=0 // pred_check_branch
    %315 = sbr.rel (%p313) target = $region25
  $region24: #{tpu_custom_call.1} parent=0 // pred_region
    %v316 = vld [vmem:[#allocation2] sm:$0xff]
    %v317 = vld [vmem:[#allocation2 + $0x8] sm:$0xff]
    %v318 = vld [vmem:[#allocation2 + $0x10] sm:$0xff]
    %v319 = vld [vmem:[#allocation2 + $0x18] sm:$0xff]
    %v320 = vld [vmem:[#allocation2 + $0x20] sm:$0xff]
    %v321 = vld [vmem:[#allocation2 + $0x28] sm:$0xff]
    %v322 = vld [vmem:[#allocation2 + $0x30] sm:$0xff]
    %v323 = vld [vmem:[#allocation2 + $0x38] sm:$0xff]
    %v324 = vld [vmem:[#allocation2 + $0x40] sm:$0xff]
    %v325 = vld [vmem:[#allocation2 + $0x48] sm:$0xff]
    %v326 = vld [vmem:[#allocation2 + $0x50] sm:$0xff]
    %v327 = vld [vmem:[#allocation2 + $0x58] sm:$0xff]
    %v328 = vld [vmem:[#allocation2 + $0x60] sm:$0xff]
    %v329 = vld [vmem:[#allocation2 + $0x68] sm:$0xff]
    %v330 = vld [vmem:[#allocation2 + $0x70] sm:$0xff]
    %v331 = vld [vmem:[#allocation2 + $0x78] sm:$0xff]
    %v332 = vld [vmem:[%s2] sm:$0x1]
    %v334 = vlaneseq
    %v335 = vshrl.u32 %v334, 7
    %v336 = vsub.s32 0, %v335
    %v337 = vrot.slane %v332, %v336
    %v339 = vmul.f32 %v316, %v337
    %v340 = vmul.f32 %v317, %v337
    %v341 = vmul.f32 %v318, %v337
    %v342 = vmul.f32 %v319, %v337
    %v343 = vmul.f32 %v320, %v337
    %v344 = vmul.f32 %v321, %v337
    %v345 = vmul.f32 %v322, %v337
    %v346 = vmul.f32 %v323, %v337
    %v347 = vmul.f32 %v324, %v337
    %v348 = vmul.f32 %v325, %v337
    %v349 = vmul.f32 %v326, %v337
    %v350 = vmul.f32 %v327, %v337
    %v351 = vmul.f32 %v328, %v337
    %v352 = vmul.f32 %v329, %v337
    %v353 = vmul.f32 %v330, %v337
    %v354 = vmul.f32 %v331, %v337
    %v355 = vld [vmem:[%s3] sm:$0x1]
    %v357 = vlaneseq
    %v358 = vshrl.u32 %v357, 7
    %v359 = vsub.s32 0, %v358
    %v360 = vrot.slane %v355, %v359
    %v362 = vadd.f32 %v339, %v360
    %v363 = vadd.f32 %v340, %v360
    %v364 = vadd.f32 %v341, %v360
    %v365 = vadd.f32 %v342, %v360
    %v366 = vadd.f32 %v343, %v360
    %v367 = vadd.f32 %v344, %v360
    %v368 = vadd.f32 %v345, %v360
    %v369 = vadd.f32 %v346, %v360
    %v370 = vadd.f32 %v347, %v360
    %v371 = vadd.f32 %v348, %v360
    %v372 = vadd.f32 %v349, %v360
    %v373 = vadd.f32 %v350, %v360
    %v374 = vadd.f32 %v351, %v360
    %v375 = vadd.f32 %v352, %v360
    %v376 = vadd.f32 %v353, %v360
    %v377 = vadd.f32 %v354, %v360
    %v378 = vmax.f32 %v362, 0.0
    %v379 = vmax.f32 %v363, 0.0
    %v380 = vmax.f32 %v364, 0.0
    %v381 = vmax.f32 %v365, 0.0
    %v382 = vmax.f32 %v366, 0.0
    %v383 = vmax.f32 %v367, 0.0
    %v384 = vmax.f32 %v368, 0.0
    %v385 = vmax.f32 %v369, 0.0
    %v386 = vmax.f32 %v370, 0.0
    %v387 = vmax.f32 %v371, 0.0
    %v388 = vmax.f32 %v372, 0.0
    %v389 = vmax.f32 %v373, 0.0
    %v390 = vmax.f32 %v374, 0.0
    %v391 = vmax.f32 %v375, 0.0
    %v392 = vmax.f32 %v376, 0.0
    %v393 = vmax.f32 %v377, 0.0
    %v394 = vpack.c.bf16 %v379, %v378
    %v395 = vpack.c.bf16 %v381, %v380
    %v396 = vpack.c.bf16 %v383, %v382
    %v397 = vpack.c.bf16 %v385, %v384
    %v398 = vpack.c.bf16 %v387, %v386
    %v399 = vpack.c.bf16 %v389, %v388
    %v400 = vpack.c.bf16 %v391, %v390
    %v401 = vpack.c.bf16 %v393, %v392
    %v410 = vunpack.c.l.b16 %v394
    %v411 = vunpack.c.h.b16 %v394
    %v412 = vunpack.c.l.b16 %v395
    %v413 = vunpack.c.h.b16 %v395
    %v414 = vunpack.c.l.b16 %v396
    %v415 = vunpack.c.h.b16 %v396
    %v416 = vunpack.c.l.b16 %v397
    %v417 = vunpack.c.h.b16 %v397
    %v418 = vunpack.c.l.b16 %v398
    %v419 = vunpack.c.h.b16 %v398
    %v420 = vunpack.c.l.b16 %v399
    %v421 = vunpack.c.h.b16 %v399
    %v422 = vunpack.c.l.b16 %v400
    %v423 = vunpack.c.h.b16 %v400
    %v424 = vunpack.c.l.b16 %v401
    %v425 = vunpack.c.h.b16 %v401
    %v426 = vpack.c.b16 %v410, %v410
    %v427 = vpack.c.b16 %v411, %v411
    %v428 = vpack.c.b16 %v412, %v412
    %v429 = vpack.c.b16 %v413, %v413
    %v430 = vpack.c.b16 %v414, %v414
    %v431 = vpack.c.b16 %v415, %v415
    %v432 = vpack.c.b16 %v416, %v416
    %v433 = vpack.c.b16 %v417, %v417
    %v434 = vpack.c.b16 %v418, %v418
    %v435 = vpack.c.b16 %v419, %v419
    %v436 = vpack.c.b16 %v420, %v420
    %v437 = vpack.c.b16 %v421, %v421
    %v438 = vpack.c.b16 %v422, %v422
    %v439 = vpack.c.b16 %v423, %v423
    %v440 = vpack.c.b16 %v424, %v424
    %v441 = vpack.c.b16 %v425, %v425
    %vm458 = vcmask 519168
    %459 = vst.msk [vmem:[%s4] sm:$0xf] %vm458, %v426
    %460 = vst.msk [vmem:[%s4 + $0x4] sm:$0xf] %vm458, %v427
    %461 = vst.msk [vmem:[%s4 + $0x8] sm:$0xf] %vm458, %v428
    %462 = vst.msk [vmem:[%s4 + $0xc] sm:$0xf] %vm458, %v429
    %463 = vst.msk [vmem:[%s4 + $0x10] sm:$0xf] %vm458, %v430
    %464 = vst.msk [vmem:[%s4 + $0x14] sm:$0xf] %vm458, %v431
    %465 = vst.msk [vmem:[%s4 + $0x18] sm:$0xf] %vm458, %v432
    %466 = vst.msk [vmem:[%s4 + $0x1c] sm:$0xf] %vm458, %v433
    %467 = vst.msk [vmem:[%s4 + $0x20] sm:$0xf] %vm458, %v434
    %468 = vst.msk [vmem:[%s4 + $0x24] sm:$0xf] %vm458, %v435
    %469 = vst.msk [vmem:[%s4 + $0x28] sm:$0xf] %vm458, %v436
    %470 = vst.msk [vmem:[%s4 + $0x2c] sm:$0xf] %vm458, %v437
    %471 = vst.msk [vmem:[%s4 + $0x30] sm:$0xf] %vm458, %v438
    %472 = vst.msk [vmem:[%s4 + $0x34] sm:$0xf] %vm458, %v439
    %473 = vst.msk [vmem:[%s4 + $0x38] sm:$0xf] %vm458, %v440
    %474 = vst.msk [vmem:[%s4 + $0x3c] sm:$0xf] %vm458, %v441
  $region25: #{tpu_custom_call.1} parent=0 // pred_fallthru
    _
  // Predicated region
  $region26: #{tpu_custom_call.1} parent=0 // pred_check
    _
  $region27: #{tpu_custom_call.1} parent=0 // pred_check_branch
    %476 = sbr.rel (0) target = $region29
  $region28: #{tpu_custom_call.1} parent=0 // pred_region
    _
  $region29: #{tpu_custom_call.1} parent=0 // pred_fallthru
    _
  // Predicated region
  $region30: #{tpu_custom_call.1} parent=0 // pred_check
    _
  $region31: #{tpu_custom_call.1} parent=0 // pred_check_branch
    %478 = sbr.rel (0) target = $region33
  $region32: #{tpu_custom_call.1} parent=0 // pred_region
    _
  $region33: #{tpu_custom_call.1} parent=0 // pred_fallthru
    _

</llo_original>
